<compile_context>
chip_gen: v5e
topology: v5e:2x2
jax: 0.10.0
libtpu: 0.0.40
codegen_flags: <defaults>
</compile_context>

<pallas_src>
import functools

import jax
import jax.numpy as jnp
from jax import lax
from jax.experimental import pallas as pl
from jax.experimental.pallas import tpu as pltpu


def _multiloss_kernel(logvars_ref, x_ref, w_ref, b_ref, labels_ref, out_ref):
    """One (batch-tile, head) grid step:

    partial(i) += log_vars[h] * sum_over_tile( CE(x_tile @ W[h] + b[h], labels[h]) )
    """
    h = pl.program_id(1)

    # Single MXU push for this step: bf16 [TB, D] x bf16 [D, C] -> f32 [TB, C].
    logits = (
        jnp.dot(x_ref[...], w_ref[0], preferred_element_type=jnp.float32)
        + b_ref[0]
    )

    # Numerically-stable log-softmax + label gather, all in f32.
    m = jnp.max(logits, axis=-1, keepdims=True)                       # [TB, 1]
    lse = m + jnp.log(jnp.sum(jnp.exp(logits - m), axis=-1, keepdims=True))
    class_ids = lax.broadcasted_iota(jnp.int32, logits.shape, 1)      # [TB, C]
    lab = labels_ref[0]                                               # [TB, 1]
    sel = jnp.sum(jnp.where(class_ids == lab, logits, 0.0),
                  axis=-1, keepdims=True)                             # [TB, 1]

    # Scalar partial sum for this head, weighted by log_vars[h] (SMEM scalar).
    partial = logvars_ref[h] * jnp.sum(lse - sel)
    upd = jnp.broadcast_to(partial, out_ref.shape)

    # Output block is resident across the (inner, "arbitrary") head axis:
    # initialize at h == 0, accumulate afterwards.
    @pl.when(h == 0)
    def _():
        out_ref[...] = upd

    @pl.when(h > 0)
    def _():
        out_ref[...] += upd


@functools.partial(jax.jit, static_argnames=("tile_b",))
def custom_multi_loss(x, w, b, labels, log_vars, *, tile_b=512):
    """sum_h mean_b( CrossEntropy(x @ w[h] + b[h], labels[h]) ) * log_vars[h].

    x:        [B, D] float32
    w:        [H, D, C] float32
    b:        [H, C] float32
    labels:   [H, B] int32 (class indices)
    log_vars: [H] float32
    """
    B, D = x.shape
    H, _, C = w.shape

    TB = min(tile_b, B)
    assert B % TB == 0, "batch must be divisible by the batch tile"
    assert TB == B or TB % 16 == 0, "batch tile must be a multiple of 16 (bf16 sublanes)"
    num_tiles = B // TB

    # bf16 for the MXU operands / DMA stream; everything downstream is f32.
    x_bf = x.astype(jnp.bfloat16)
    w_bf = w.astype(jnp.bfloat16)
    b3 = b.reshape(H, 1, C).astype(jnp.float32)
    labels3 = labels.reshape(H, B, 1).astype(jnp.int32)

    grid_spec = pltpu.PrefetchScalarGridSpec(
        num_scalar_prefetch=1,                 # log_vars -> SMEM
        grid=(num_tiles, H),                   # batch tiles (parallel) x heads (arbitrary)
        in_specs=[
            # x block index is independent of h -> fetched once per batch tile.
            pl.BlockSpec((TB, D), lambda i, h, lv: (i, 0)),       # x     [B, D]
            pl.BlockSpec((1, D, C), lambda i, h, lv: (h, 0, 0)),  # W     [H, D, C]
            pl.BlockSpec((1, 1, C), lambda i, h, lv: (h, 0, 0)),  # b     [H, 1, C]
            pl.BlockSpec((1, TB, 1), lambda i, h, lv: (h, i, 0)), # labels[H, B, 1]
        ],
        # One lane-padded partial-sum row per batch tile (accumulated over h).
        out_specs=pl.BlockSpec((1, 1, 128), lambda i, h, lv: (i, 0, 0)),
    )

    partials = pl.pallas_call(
        _multiloss_kernel,
        grid_spec=grid_spec,
        out_shape=jax.ShapeDtypeStruct((num_tiles, 1, 128), jnp.float32),
        compiler_params=pltpu.CompilerParams(
            dimension_semantics=("parallel", "arbitrary"),
        ),
    )(log_vars, x_bf, w_bf, b3, labels3)

    # Tiny final reduction in f32: sum of per-tile weighted sums, / B for the
    # per-head batch mean (log_vars weighting already applied in-kernel).
    return jnp.sum(partials[:, 0, 0]) / B


def _reference(x_bf, w_bf, b, labels, log_vars):
    """Pure-JAX reference mirroring PyTorch CrossEntropyLoss semantics
    (same bf16 matmul operands / f32 accumulation as the kernel)."""
    H = w_bf.shape[0]
    total = jnp.float32(0.0)
    for h in range(H):
        logits = jnp.dot(x_bf, w_bf[h], preferred_element_type=jnp.float32) + b[h]
        logp = jax.nn.log_softmax(logits, axis=-1)
        nll = -jnp.take_along_axis(logp, labels[h][:, None], axis=-1)   # [B, 1]
        total = total + jnp.mean(nll) * log_vars[h]
    return total


if __name__ == "__main__":
    key = jax.random.PRNGKey(0)
    kx, kw, kb, kl = jax.random.split(key, 4)

    # Small shapes consistent with the module (2-head classifier).
    B, D, C, H = 8, 32, 16, 2
    x = jax.random.normal(kx, (B, D), dtype=jnp.float32)
    w = jax.random.normal(kw, (H, D, C), dtype=jnp.float32) * 0.1
    b = jax.random.normal(kb, (H, C), dtype=jnp.float32) * 0.1
    labels = jax.random.randint(kl, (H, B), 0, C, dtype=jnp.int32)
    log_vars = jnp.ones((H,), dtype=jnp.float32)   # nn.Parameter(torch.ones(2)), frozen

    loss = custom_multi_loss(x, w, b, labels, log_vars)
    jax.block_until_ready(loss)
    ref = _reference(x.astype(jnp.bfloat16), w.astype(jnp.bfloat16), b, labels, log_vars)
    assert jnp.allclose(loss, ref, rtol=1e-4, atol=1e-4), (loss, ref)

    # Larger batch exercises the multi-tile grid / pipelined accumulation path.
    B2 = 256
    x2 = jax.random.normal(kx, (B2, D), dtype=jnp.float32)
    labels2 = jax.random.randint(kl, (H, B2), 0, C, dtype=jnp.int32)
    loss2 = custom_multi_loss(x2, w, b, labels2, log_vars, tile_b=64)
    jax.block_until_ready(loss2)
    ref2 = _reference(x2.astype(jnp.bfloat16), w.astype(jnp.bfloat16), b, labels2, log_vars)
    assert jnp.allclose(loss2, ref2, rtol=1e-4, atol=1e-4), (loss2, ref2)

    print("KERNEL_OK")
</pallas_src>

<mosaic_0001>
module attributes {stable_mosaic.version = 11 : i64} {
  func.func @_multiloss_kernel(%arg0: i32, %arg1: i32, %arg2: memref<2xf32, #tpu.memory_space<smem>>, %arg3: memref<8x32xbf16, #tpu.memory_space<vmem>>, %arg4: memref<1x32x16xbf16, #tpu.memory_space<vmem>>, %arg5: memref<1x1x16xf32, #tpu.memory_space<vmem>>, %arg6: memref<1x8x1xi32, #tpu.memory_space<vmem>>, %arg7: memref<1x1x128xf32, #tpu.memory_space<vmem>>) attributes {dimension_semantics = [#tpu.dimension_semantics<parallel>, #tpu.dimension_semantics<arbitrary>], iteration_bounds = array<i64: 1, 2>, scalar_prefetch = 1 : i64, scratch_operands = 0 : i64, tpu.core_type = #tpu.core_type<tc>, window_params = [{transform_indices = @transform_0, window_bounds = array<i64: 8, 32>}, {transform_indices = @transform_1, window_bounds = array<i64: 1, 32, 16>}, {transform_indices = @transform_2, window_bounds = array<i64: 1, 1, 16>}, {transform_indices = @transform_3, window_bounds = array<i64: 1, 8, 1>}, {transform_indices = @transform_4, window_bounds = array<i64: 1, 1, 128>}]} {
    %c0 = arith.constant 0 : index
    %c0_0 = arith.constant 0 : index
    %0 = vector.load %arg3[%c0, %c0_0] : memref<8x32xbf16, #tpu.memory_space<vmem>>, vector<8x32xbf16>
    %c0_1 = arith.constant 0 : index
    %c0_2 = arith.constant 0 : index
    %c0_3 = arith.constant 0 : index
    %1 = vector.load %arg4[%c0_1, %c0_2, %c0_3] : memref<1x32x16xbf16, #tpu.memory_space<vmem>>, vector<1x32x16xbf16>
    %2 = vector.shape_cast %1 : vector<1x32x16xbf16> to vector<32x16xbf16>
    %cst = arith.constant dense<0.000000e+00> : vector<8x16xf32>
    %3 = tpu.matmul %0, %2, %cst {dimension_numbers = #tpu.dot_dimension_numbers<[1], [0], [0], [1], [0, 0, 1, 1], [], []>} : vector<8x32xbf16>, vector<32x16xbf16>, vector<8x16xf32> -> vector<8x16xf32>
    %c0_4 = arith.constant 0 : index
    %c0_5 = arith.constant 0 : index
    %c0_6 = arith.constant 0 : index
    %4 = vector.load %arg5[%c0_4, %c0_5, %c0_6] : memref<1x1x16xf32, #tpu.memory_space<vmem>>, vector<1x1x16xf32>
    %5 = vector.shape_cast %4 : vector<1x1x16xf32> to vector<1x16xf32>
    %6 = vector.broadcast %5 : vector<1x16xf32> to vector<8x16xf32>
    %7 = arith.addf %3, %6 : vector<8x16xf32>
    %cst_7 = arith.constant dense<0xFF800000> : vector<8xf32>
    %8 = vector.multi_reduction <maximumf>, %7, %cst_7 [1] : vector<8x16xf32> to vector<8xf32>
    %9 = vector.shape_cast %8 : vector<8xf32> to vector<8x1xf32>
    %10 = vector.broadcast %9 : vector<8x1xf32> to vector<8x16xf32>
    %11 = arith.subf %7, %10 : vector<8x16xf32>
    %12 = math.exp %11 : vector<8x16xf32>
    %cst_8 = arith.constant dense<0.000000e+00> : vector<8xf32>
    %13 = vector.multi_reduction <add>, %12, %cst_8 [1] : vector<8x16xf32> to vector<8xf32>
    %14 = vector.shape_cast %13 : vector<8xf32> to vector<8x1xf32>
    %15 = math.log %14 : vector<8x1xf32>
    %16 = arith.addf %9, %15 : vector<8x1xf32>
    %17 = tpu.iota {dimensions = array<i32: 1>} : vector<8x16xi32>
    %c0_9 = arith.constant 0 : index
    %c0_10 = arith.constant 0 : index
    %c0_11 = arith.constant 0 : index
    %18 = vector.load %arg6[%c0_9, %c0_10, %c0_11] : memref<1x8x1xi32, #tpu.memory_space<vmem>>, vector<1x8x1xi32>
    %19 = vector.shape_cast %18 : vector<1x8x1xi32> to vector<8x1xi32>
    %20 = vector.broadcast %19 : vector<8x1xi32> to vector<8x16xi32>
    %21 = arith.cmpi eq, %17, %20 : vector<8x16xi32>
    %cst_12 = arith.constant 0.000000e+00 : f32
    %22 = vector.broadcast %cst_12 : f32 to vector<8x16xf32>
    %23 = arith.select %21, %7, %22 : vector<8x16xi1>, vector<8x16xf32>
    %cst_13 = arith.constant dense<0.000000e+00> : vector<8xf32>
    %24 = vector.multi_reduction <add>, %23, %cst_13 [1] : vector<8x16xf32> to vector<8xf32>
    %25 = vector.shape_cast %24 : vector<8xf32> to vector<8x1xf32>
    %26 = arith.index_cast %arg1 : i32 to index
    %27 = memref.load %arg2[%26] : memref<2xf32, #tpu.memory_space<smem>>
    %28 = arith.subf %16, %25 : vector<8x1xf32>
    %29 = vector.shape_cast %28 : vector<8x1xf32> to vector<1x8x1xf32>
    %cst_14 = arith.constant dense<0.000000e+00> : vector<1xf32>
    %30 = vector.multi_reduction <add>, %29, %cst_14 [1, 2] : vector<1x8x1xf32> to vector<1xf32>
    %31 = vector.shape_cast %30 : vector<1xf32> to vector<1x1x1xf32>
    %32 = vector.extract %31[0, 0, 0] : f32 from vector<1x1x1xf32>
    %33 = arith.mulf %27, %32 : f32
    %34 = vector.broadcast %33 : f32 to vector<1x1x128xf32>
    %c0_i32 = arith.constant 0 : i32
    %35 = arith.cmpi eq, %arg1, %c0_i32 : i32
    %36 = arith.extui %35 : i1 to i32
    %c0_i32_15 = arith.constant 0 : i32
    %37 = arith.cmpi ne, %36, %c0_i32_15 : i32
    scf.if %37 {
      %c0_18 = arith.constant 0 : index
      %c0_19 = arith.constant 0 : index
      %c0_20 = arith.constant 0 : index
      %41 = vector.load %arg7[%c0_18, %c0_19, %c0_20] : memref<1x1x128xf32, #tpu.memory_space<vmem>>, vector<1x1x128xf32>
      tpu.vector_store %arg7[%c0_18, %c0_19, %c0_20], %34 {strides = array<i32>} : memref<1x1x128xf32, #tpu.memory_space<vmem>>, vector<1x1x128xf32>,
    } else {
    }
    %c0_i32_16 = arith.constant 0 : i32
    %38 = arith.cmpi sgt, %arg1, %c0_i32_16 : i32
    %39 = arith.extui %38 : i1 to i32
    %c0_i32_17 = arith.constant 0 : i32
    %40 = arith.cmpi ne, %39, %c0_i32_17 : i32
    scf.if %40 {
      %c0_18 = arith.constant 0 : index
      %c0_19 = arith.constant 0 : index
      %c0_20 = arith.constant 0 : index
      %41 = vector.load %arg7[%c0_18, %c0_19, %c0_20] : memref<1x1x128xf32, #tpu.memory_space<vmem>>, vector<1x1x128xf32>
      %42 = arith.addf %41, %34 : vector<1x1x128xf32>
      %c0_21 = arith.constant 0 : index
      %c0_22 = arith.constant 0 : index
      %c0_23 = arith.constant 0 : index
      %43 = vector.load %arg7[%c0_21, %c0_22, %c0_23] : memref<1x1x128xf32, #tpu.memory_space<vmem>>, vector<1x1x128xf32>
      tpu.vector_store %arg7[%c0_21, %c0_22, %c0_23], %42 {strides = array<i32>} : memref<1x1x128xf32, #tpu.memory_space<vmem>>, vector<1x1x128xf32>,
    } else {
    }
    return
  }
  func.func @transform_0(%arg0: i32, %arg1: i32, %arg2: memref<2xf32, #tpu.memory_space<smem>>) -> (i32, i32) {
    %c0_i32 = arith.constant 0 : i32
    %c0_i32_0 = arith.constant 0 : i32
    return %arg0, %c0_i32 : i32, i32
  }
  func.func @transform_1(%arg0: i32, %arg1: i32, %arg2: memref<2xf32, #tpu.memory_space<smem>>) -> (i32, i32, i32) {
    %c0_i32 = arith.constant 0 : i32
    %c0_i32_0 = arith.constant 0 : i32
    %c0_i32_1 = arith.constant 0 : i32
    return %arg1, %c0_i32, %c0_i32_0 : i32, i32, i32
  }
  func.func @transform_2(%arg0: i32, %arg1: i32, %arg2: memref<2xf32, #tpu.memory_space<smem>>) -> (i32, i32, i32) {
    %c0_i32 = arith.constant 0 : i32
    %c0_i32_0 = arith.constant 0 : i32
    %c0_i32_1 = arith.constant 0 : i32
    return %arg1, %c0_i32, %c0_i32_0 : i32, i32, i32
  }
  func.func @transform_3(%arg0: i32, %arg1: i32, %arg2: memref<2xf32, #tpu.memory_space<smem>>) -> (i32, i32, i32) {
    %c0_i32 = arith.constant 0 : i32
    %c0_i32_0 = arith.constant 0 : i32
    return %arg1, %arg0, %c0_i32 : i32, i32, i32
  }
  func.func @transform_4(%arg0: i32, %arg1: i32, %arg2: memref<2xf32, #tpu.memory_space<smem>>) -> (i32, i32, i32) {
    %c0_i32 = arith.constant 0 : i32
    %c0_i32_0 = arith.constant 0 : i32
    %c0_i32_1 = arith.constant 0 : i32
    return %arg0, %c0_i32, %c0_i32_0 : i32, i32, i32
  }
}

</mosaic_0001>

<llo_original>
// kernel: custom_multi_loss.1
$region0: #{custom_multi_loss.1}
  #allocation0 [shape = 'u32[]', space=smem, size = 0x4, offset = 0x4, fixed_abs, tag = 'smem constant byte address 0x4 - core index']
  #allocation1 [shape = 'u32[72,128]{1,0:T(1,128)}', space=vmem, size = 0x9000, scoped, tag = 'internal scratch']
  #allocation2 [shape = 's32[1]{0}', space=sflag, size = 0x4, scoped, tag = 'scoped memory for custom_multi_loss.1']
  #allocation3 [shape = 'u8[512]{0}', space=smem, size = 0x200, scoped, tag = 'prefetched SMEM operand 0']
  %s0 = inlined_call_operand.vmem [shape: f32[2], index: 0, kind: input, shape index: {}]
  %s1 = inlined_call_operand.vmem [shape: bf16[8,32], index: 1, kind: input, shape index: {}]
  %s2 = inlined_call_operand.vmem [shape: bf16[2,32,16], index: 2, kind: input, shape index: {}]
  %s3 = inlined_call_operand.vmem [shape: f32[2,1,16], index: 3, kind: input, shape index: {}]
  %s4 = inlined_call_operand.vmem [shape: s32[2,8,1], index: 4, kind: input, shape index: {}]
  %s5 = inlined_call_operand.vmem [shape: f32[1,1,128], index: 5, kind: output, shape index: {}]
  %s6 = sld [smem:[#allocation0]]
  $region57: #{custom_multi_loss.1} parent=0
    _
  %s8 = ssub.s32 1, %s6
  %s9 = scalar_select 0, %s8, %s6
  %s11 = sshll.u32 %s0, 4
  %s12 = int_to_ptr.vmem [resolvable:$true] %s11
  %14 = dma.vmem_to_smem %s12, 16, [#allocation3], [#allocation2]
  %16 = dma.done [#allocation2], 16
  %17 = sfence
  loop: start=0, step=1, limit=4
  $region2: #{custom_multi_loss.1} parent=0 // loop_pre_header
    _
  $region3: #{custom_multi_loss.1} parent=0 // loop_header
    %s19 = sphi 0, %s23
    %p20 = scmp.ge.s32.totalorder %s19, 4
    %s26 = sphi 0, %s38
    %s27 = sphi 0, %s34
    %s28 = sphi 0, %s26
    %s29 = sphi 0, %s27
    %s30 = sphi 0, %s28
    %s31 = sphi 0, %s29
    %s41 = sphi 0, %s43
    %s44 = sphi 0, %s41
    %s45 = sphi 0, %s44
    %s61 = sphi 0, %s45
    %s67 = sphi 0, %s69
    %s70 = sphi 0, %s67
    %s71 = sphi 0, %s70
    %s87 = sphi 0, %s71
    %s93 = sphi 0, %s95
    %s96 = sphi 0, %s93
    %s97 = sphi 0, %s96
    %s113 = sphi 0, %s97
    %s121 = sphi 0, %s123
    %s124 = sphi 0, %s121
    %s125 = sphi 0, %s124
    %s141 = sphi 0, %s125
    %s147 = sphi 0, %s149
    %s150 = sphi 0, %s147
    %s151 = sphi 0, %s150
    %s167 = sphi 0, %s151
  $region4: #{custom_multi_loss.1} parent=0 // loop_header_branch
    %22 = sbr.rel (%p20) target = $region8
  $region5: #{custom_multi_loss.1} parent=0 // loop_body
    %s24 = ssub.s32 %s19, 1
    %s25 = ssub.s32 %s19, 2
    %s32 = sadd.s32 1, %s27
    %p33 = scmp.ge.s32.totalorder %s32, 2
    %s34 = scalar_select %p33, 0, %s32
    %s35 = sadd.s32 1, %s26
    %s36 = scalar_select %p33, %s35, %s26
    %p37 = scmp.ge.s32.totalorder %s36, 1
    %s38 = scalar_select %p37, 0, %s36
    %s39 = ssub.s32 %s26, %s38
    %p40 = scmp.eq.s32.totalorder %s39, 0
    %s42 = sadd.s32 %s41, 1
    %s43 = scalar_select %p40, %s41, %s42
    %p46 = pneg %p40
    %p47 = scmp.eq.s32.totalorder %s19, 1
    %p48 = por %p46, %p47
    %p49 = scmp.ne.s32.totalorder %s41, %s44
    %p50 = scmp.eq.s32.totalorder %s19, 0
    %p51 = por %p49, %p50
    %p52 = scmp.ne.s32.totalorder %s41, %s44
    %p53 = scmp.eq.s32.totalorder %s24, 1
    %p54 = por %p52, %p53
    %p55 = scmp.ne.s32.totalorder %s44, %s45
    %p56 = scmp.eq.s32.totalorder %s24, 0
    %p57 = por %p55, %p56
    %p58 = scmp.ne.s32.totalorder %s44, %s45
    %p59 = scmp.eq.s32.totalorder %s25, 1
    %p60 = por %p58, %p59
    %p62 = scmp.ne.s32.totalorder %s45, %s61
    %p63 = scmp.eq.s32.totalorder %s25, 0
    %p64 = por %p62, %p63
    %s65 = ssub.s32 %s27, %s34
    %p66 = scmp.eq.s32.totalorder %s65, 0
    %s68 = sadd.s32 %s67, 1
    %s69 = scalar_select %p66, %s67, %s68
    %p72 = pneg %p66
    %p73 = scmp.eq.s32.totalorder %s19, 1
    %p74 = por %p72, %p73
    %p75 = scmp.ne.s32.totalorder %s67, %s70
    %p76 = scmp.eq.s32.totalorder %s19, 0
    %p77 = por %p75, %p76
    %p78 = scmp.ne.s32.totalorder %s67, %s70
    %p79 = scmp.eq.s32.totalorder %s24, 1
    %p80 = por %p78, %p79
    %p81 = scmp.ne.s32.totalorder %s70, %s71
    %p82 = scmp.eq.s32.totalorder %s24, 0
    %p83 = por %p81, %p82
    %p84 = scmp.ne.s32.totalorder %s70, %s71
    %p85 = scmp.eq.s32.totalorder %s25, 1
    %p86 = por %p84, %p85
    %p88 = scmp.ne.s32.totalorder %s71, %s87
    %p89 = scmp.eq.s32.totalorder %s25, 0
    %p90 = por %p88, %p89
    %s91 = ssub.s32 %s27, %s34
    %p92 = scmp.eq.s32.totalorder %s91, 0
    %s94 = sadd.s32 %s93, 1
    %s95 = scalar_select %p92, %s93, %s94
    %p98 = pneg %p92
    %p99 = scmp.eq.s32.totalorder %s19, 1
    %p100 = por %p98, %p99
    %p101 = scmp.ne.s32.totalorder %s93, %s96
    %p102 = scmp.eq.s32.totalorder %s19, 0
    %p103 = por %p101, %p102
    %p104 = scmp.ne.s32.totalorder %s93, %s96
    %p105 = scmp.eq.s32.totalorder %s24, 1
    %p106 = por %p104, %p105
    %p107 = scmp.ne.s32.totalorder %s96, %s97
    %p108 = scmp.eq.s32.totalorder %s24, 0
    %p109 = por %p107, %p108
    %p110 = scmp.ne.s32.totalorder %s96, %s97
    %p111 = scmp.eq.s32.totalorder %s25, 1
    %p112 = por %p110, %p111
    %p114 = scmp.ne.s32.totalorder %s97, %s113
    %p115 = scmp.eq.s32.totalorder %s25, 0
    %p116 = por %p114, %p115
    %s117 = ssub.s32 %s27, %s34
    %s118 = ssub.s32 %s26, %s38
    %s119 = sor.u32 %s117, %s118
    %p120 = scmp.eq.s32.totalorder %s119, 0
    %s122 = sadd.s32 %s121, 1
    %s123 = scalar_select %p120, %s121, %s122
    %p126 = pneg %p120
    %p127 = scmp.eq.s32.totalorder %s19, 1
    %p128 = por %p126, %p127
    %p129 = scmp.ne.s32.totalorder %s121, %s124
    %p130 = scmp.eq.s32.totalorder %s19, 0
    %p131 = por %p129, %p130
    %p132 = scmp.ne.s32.totalorder %s121, %s124
    %p133 = scmp.eq.s32.totalorder %s24, 1
    %p134 = por %p132, %p133
    %p135 = scmp.ne.s32.totalorder %s124, %s125
    %p136 = scmp.eq.s32.totalorder %s24, 0
    %p137 = por %p135, %p136
    %p138 = scmp.ne.s32.totalorder %s124, %s125
    %p139 = scmp.eq.s32.totalorder %s25, 1
    %p140 = por %p138, %p139
    %p142 = scmp.ne.s32.totalorder %s125, %s141
    %p143 = scmp.eq.s32.totalorder %s25, 0
    %p144 = por %p142, %p143
    %s145 = ssub.s32 %s26, %s38
    %p146 = scmp.eq.s32.totalorder %s145, 0
    %s148 = sadd.s32 %s147, 1
    %s149 = scalar_select %p146, %s147, %s148
    %p152 = pneg %p146
    %p153 = scmp.eq.s32.totalorder %s19, 1
    %p154 = por %p152, %p153
    %p155 = scmp.ne.s32.totalorder %s147, %s150
    %p156 = scmp.eq.s32.totalorder %s19, 0
    %p157 = por %p155, %p156
    %p158 = scmp.ne.s32.totalorder %s147, %s150
    %p159 = scmp.eq.s32.totalorder %s24, 1
    %p160 = por %p158, %p159
    %p161 = scmp.ne.s32.totalorder %s150, %s151
    %p162 = scmp.eq.s32.totalorder %s24, 0
    %p163 = por %p161, %p162
    %p164 = scmp.ne.s32.totalorder %s150, %s151
    %p165 = scmp.eq.s32.totalorder %s25, 1
    %p166 = por %p164, %p165
    %p168 = scmp.ne.s32.totalorder %s151, %s167
    %p169 = scmp.eq.s32.totalorder %s25, 0
    %p170 = por %p168, %p169
    %p171 = scmp.le.s32.totalorder 1, %s19
    %p172 = scmp.lt.s32.totalorder %s19, 3
    %p173 = pnand %p171, %p172
    %p174 = pneg %p173
    // Predicated region
    $region9: #{custom_multi_loss.1} parent=5 // pred_check
      _
    $region10: #{custom_multi_loss.1} parent=5 // pred_check_branch
      %176 = sbr.rel (%p173) target = $region12
    $region11: #{custom_multi_loss.1} parent=5 // pred_region
      %s177 = ssub.s32 %s19, 1
      // Predicated region
      $region13: #{custom_multi_loss.1} parent=11 // pred_check
        %p178 = pneg %p57
      $region14: #{custom_multi_loss.1} parent=11 // pred_check_branch
        %180 = sbr.rel (%p178) target = $region16
      $region15: #{custom_multi_loss.1} parent=11 // pred_region
        %p181 = scmp.lt.s32.totalorder %s28, 0
        %s182 = scalar_select %p181, %s28, 0
        %s183 = smul.addr %s182, 4
        %s184 = scalar_lea.vmem %s1, %s183
      $region16: #{custom_multi_loss.1} parent=11 // pred_fallthru
        _
    $region12: #{custom_multi_loss.1} parent=5 // pred_fallthru
      _
    %p185 = scmp.lt.s32.totalorder %s19, 2
    // Predicated region
    $region17: #{custom_multi_loss.1} parent=5 // pred_check
      %p186 = pneg %p185
    $region18: #{custom_multi_loss.1} parent=5 // pred_check_branch
      %188 = sbr.rel (%p186) target = $region20
    $region19: #{custom_multi_loss.1} parent=5 // pred_region
      // Predicated region
      $region21: #{custom_multi_loss.1} parent=19 // pred_check
        %p189 = pneg %p77
      $region22: #{custom_multi_loss.1} parent=19 // pred_check_branch
        %191 = sbr.rel (%p189) target = $region24
      $region23: #{custom_multi_loss.1} parent=19 // pred_region
        %p192 = scmp.lt.s32.totalorder %s27, 1
        %s193 = scalar_select %p192, %s27, 1
        %s194 = smul.addr %s193, 4
        %s195 = smul.addr %s194, 4
        %s196 = scalar_lea.vmem %s2, %s195
      $region24: #{custom_multi_loss.1} parent=19 // pred_fallthru
        _
      // Predicated region
      $region25: #{custom_multi_loss.1} parent=19 // pred_check
        %p197 = pneg %p103
      $region26: #{custom_multi_loss.1} parent=19 // pred_check_branch
        %199 = sbr.rel (%p197) target = $region28
      $region27: #{custom_multi_loss.1} parent=19 // pred_region
        %p200 = scmp.lt.s32.totalorder %s27, 1
        %s201 = scalar_select %p200, %s27, 1
        %s202 = scalar_lea.vmem %s3, %s201
      $region28: #{custom_multi_loss.1} parent=19 // pred_fallthru
        _
      // Predicated region
      $region29: #{custom_multi_loss.1} parent=19 // pred_check
        %p203 = pneg %p131
      $region30: #{custom_multi_loss.1} parent=19 // pred_check_branch
        %205 = sbr.rel (%p203) target = $region32
      $region31: #{custom_multi_loss.1} parent=19 // pred_region
        %p206 = scmp.lt.s32.totalorder %s27, 1
        %s207 = scalar_select %p206, %s27, 1
        %p208 = scmp.lt.s32.totalorder %s26, 0
        %s209 = scalar_select %p208, %s26, 0
        %s210 = sadd.s32 %s209, %s207
        %s211 = smul.addr %s210, 8
        %s212 = scalar_lea.vmem %s4, %s211
      $region32: #{custom_multi_loss.1} parent=19 // pred_fallthru
        _
    $region20: #{custom_multi_loss.1} parent=5 // pred_fallthru
      _
    %p213 = scmp.le.s32.totalorder 1, %s19
    %p214 = scmp.lt.s32.totalorder %s19, 3
    %p215 = pnand %p213, %p214
    %p216 = pneg %p215
    // Predicated region
    $region33: #{custom_multi_loss.1} parent=5 // pred_check
      _
    $region34: #{custom_multi_loss.1} parent=5 // pred_check_branch
      %218 = sbr.rel (%p215) target = $region36
    $region35: #{custom_multi_loss.1} parent=5 // pred_region
      %s219 = ssub.s32 %s19, 1
      %p220 = scmp.lt.s32.totalorder %s28, 0
      %s221 = scalar_select %p220, %s28, 0
      %s222 = smul.addr %s221, 4
      %s223 = scalar_lea.vmem %s1, %s222
      %p224 = pneg %p57
      %p225 = pneg %p54
      %p226 = scmp.lt.s32.totalorder %s29, 1
      %s227 = scalar_select %p226, %s29, 1
      %s228 = smul.addr %s227, 4
      %s229 = smul.addr %s228, 4
      %s230 = scalar_lea.vmem %s2, %s229
      %p231 = pneg %p83
      %p232 = pneg %p80
      %p233 = scmp.lt.s32.totalorder %s29, 1
      %s234 = scalar_select %p233, %s29, 1
      %s235 = scalar_lea.vmem %s3, %s234
      %p236 = pneg %p109
      %p237 = pneg %p106
      %p238 = scmp.lt.s32.totalorder %s29, 1
      %s239 = scalar_select %p238, %s29, 1
      %p240 = scmp.lt.s32.totalorder %s28, 0
      %s241 = scalar_select %p240, %s28, 0
      %s242 = sadd.s32 %s241, %s239
      %s243 = smul.addr %s242, 8
      %s244 = scalar_lea.vmem %s4, %s243
      %p245 = pneg %p137
      %p246 = pneg %p134
      %p247 = pneg %p163
      %p248 = pneg %p160
      %p249 = scmp.lt.s32.totalorder %s28, 0
      %s250 = scalar_select %p249, %s28, 0
      %s251 = scalar_lea.vmem %s5, %s250
      %p252 = scmp.lt.s32.totalorder %s28, 0
      %s253 = scalar_select %p252, %s28, 0
      %s254 = smul.addr %s253, 4
      %s255 = scalar_lea.vmem %s1, %s254
      %p256 = scmp.lt.s32.totalorder %s29, 1
      %s257 = scalar_select %p256, %s29, 1
      %s258 = smul.addr %s257, 4
      %s259 = smul.addr %s258, 4
      %s260 = scalar_lea.vmem %s2, %s259
      %p261 = scmp.lt.s32.totalorder %s29, 1
      %s262 = scalar_select %p261, %s29, 1
      %s263 = scalar_lea.vmem %s3, %s262
      %p264 = scmp.lt.s32.totalorder %s29, 1
      %s265 = scalar_select %p264, %s29, 1
      %p266 = scmp.lt.s32.totalorder %s28, 0
      %s267 = scalar_select %p266, %s28, 0
      %s268 = sadd.s32 %s267, %s265
      %s269 = smul.addr %s268, 8
      %s270 = scalar_lea.vmem %s4, %s269
      %p271 = scmp.lt.s32.totalorder %s28, 0
      %s272 = scalar_select %p271, %s28, 0
      %s273 = scalar_lea.vmem %s5, %s272
      %v275 = vld [vmem:[%s255] sm:$0xf]
      %v276 = vld [vmem:[%s260] sm:$0xf]
      %v277 = vld [vmem:[%s260 + $0x4] sm:$0xf]
      %v278 = vld [vmem:[%s260 + $0x8] sm:$0xf]
      %v279 = vld [vmem:[%s260 + $0xc] sm:$0xf]
      %v280 = vld [vmem:[%s263] sm:$0x1]
      %v282 = vperm.slane %v280, 0
      %v288 = vunpack.c.l.b16 %v276
      %v289 = vunpack.c.l.b16 %v277
      %v290 = vunpack.c.l.b16 %v278
      %v291 = vunpack.c.l.b16 %v279
      %v292 = vpack.c.b16 %v289, %v288
      %v293 = vpack.c.b16 %v291, %v290
      %vm296 = vcmask 261120
      %v298 = vsel %vm296, %v275, 0
      %300 = vmatpush.bf16.msra.mxu0 0
      %301 = vmatpush.bf16.msra.mxu0 0
      %302 = vmatpush.bf16.msra.mxu0 0
      %303 = vmatpush.bf16.msra.mxu0 0
      %304 = vmatpush.bf16.msra.mxu0 0
      %305 = vmatpush.bf16.msra.mxu0 0
      %306 = vmatpush.bf16.msra.mxu0 %v293
      %307 = vmatpush.bf16.msra.mxu0 %v292
      %308 = vmatmul.bf16.gmra.mxu0 %v298
      %v309 = vpop.f32.mrf.mxu0
      %v310 = vadd.f32 %v282, %v309
      %v311 = vpop.f32.mrf.mxu0
      %312 = vdwg.mxu0
      %vm313 = vcmask 130048
      %v314 = vsel %vm313, %v310, -inf
      %315 = vmax.xlane.f32.xlu0 %v314
      %v316 = vpop.xlane.xlu0 %315
      %v317 = vsub.f32 %v310, %v316
      %v318 = vmul.f32 %v317, 1.442695
      %v319 = vpow.pop %v318
      %v320 = vsel %vm313, %v319, 0.0
      %321 = vadd.xlane.f32.xlu0 %v320
      %v322 = vpop.xlane.xlu0 %321
      %v323 = vlog2.pop %v322
      %v324 = vmul.f32 %v323, 0.6931472
      %v325 = vadd.f32 %v316, %v324
      %v326 = vlaneseq
      %v327 = vand.u32 %v326, 127
      %v328 = vld [vmem:[%s270] sm:$0xff]
      %329 = vset.pattern.permute.xlu0 0
      %330 = vperm.xlu0 %329, %v328
      %v331 = vpop.permute.xlu0 %330
      %vm332 = vcmp.eq.s32.totalorder %v327, %v331
      %v333 = vsel %vm332, %v310, 0.0
      %v334 = vsel %vm313, %v333, 0.0
      %335 = vadd.xlane.f32.xlu0 %v334
      %v336 = vpop.xlane.xlu0 %335
      %s337 = sld [smem:[#allocation3 + %s29]]
      %v338 = vsub.f32 %v325, %v336
      %vm339 = vcmask 7168
      %v340 = vsel %vm339, %v338, 0.0
      %341 = vadd.xlane.f32.xlu0 %v340
      %v342 = vpop.xlane.xlu0 %341
      %v343 = vrot.slane %v342, 4
      %v344 = vadd.f32 %v342, %v343
      %v345 = vrot.slane %v344, 2
      %v346 = vadd.f32 %v344, %v345
      %v347 = vrot.slane %v346, 1
      %v348 = vadd.f32 %v346, %v347
      %s349 = vtos %v348
      %s350 = smul.f32 %s337, %s349
      %v351 = vstv %s350
      %p352 = scmp.eq.s32.totalorder %s29, 0
      // Predicated region
      $region37: #{custom_multi_loss.1} parent=35 // pred_check
        %p353 = pneg %p352
      $region38: #{custom_multi_loss.1} parent=35 // pred_check_branch
        %355 = sbr.rel (%p353) target = $region40
      $region39: #{custom_multi_loss.1} parent=35 // pred_region
        %356 = vst [vmem:[%s273] sm:$0x1] %v351
      $region40: #{custom_multi_loss.1} parent=35 // pred_fallthru
        _
      %p357 = scmp.gt.s32.totalorder %s29, 0
      // Predicated region
      $region41: #{custom_multi_loss.1} parent=35 // pred_check
        %p358 = pneg %p357
      $region42: #{custom_multi_loss.1} parent=35 // pred_check_branch
        %360 = sbr.rel (%p358) target = $region44
      $region43: #{custom_multi_loss.1} parent=35 // pred_region
        %v361 = vld [vmem:[%s273] sm:$0x1]
        %v362 = vadd.f32 %v361, %v351
        %363 = vst [vmem:[%s273] sm:$0x1] %v362
      $region44: #{custom_multi_loss.1} parent=35 // pred_fallthru
        _
      %p364 = scmp.lt.s32.totalorder %s28, 0
      %s365 = scalar_select %p364, %s28, 0
      %s366 = scalar_lea.vmem %s5, %s365
      // Predicated region
      $region45: #{custom_multi_loss.1} parent=35 // pred_check
        %p367 = pneg %p160
      $region46: #{custom_multi_loss.1} parent=35 // pred_check_branch
        %369 = sbr.rel (%p367) target = $region48
      $region47: #{custom_multi_loss.1} parent=35 // pred_region
        _
      $region48: #{custom_multi_loss.1} parent=35 // pred_fallthru
        _
      // Predicated region
      $region49: #{custom_multi_loss.1} parent=35 // pred_check
        %p370 = pneg %p160
      $region50: #{custom_multi_loss.1} parent=35 // pred_check_branch
        %372 = sbr.rel (%p370) target = $region52
      $region51: #{custom_multi_loss.1} parent=35 // pred_region
        %p373 = scmp.lt.s32.totalorder %s28, 0
        %s374 = scalar_select %p373, %s28, 0
        %s375 = scalar_lea.vmem %s5, %s374
      $region52: #{custom_multi_loss.1} parent=35 // pred_fallthru
        _
    $region36: #{custom_multi_loss.1} parent=5 // pred_fallthru
      _
    %p376 = scmp.le.s32.totalorder 2, %s19
    // Predicated region
    $region53: #{custom_multi_loss.1} parent=5 // pred_check
      %p377 = pneg %p376
    $region54: #{custom_multi_loss.1} parent=5 // pred_check_branch
      %379 = sbr.rel (%p377) target = $region56
    $region55: #{custom_multi_loss.1} parent=5 // pred_region
      %s380 = ssub.s32 %s19, 2
    $region56: #{custom_multi_loss.1} parent=5 // pred_fallthru
      _
  $region6: #{custom_multi_loss.1} parent=0 // loop_footer
    %s23 = sadd.s32 1, %s19
  $region7: #{custom_multi_loss.1} parent=0 // loop_footer_branch
    %18 = sbr.rel target = $region3
  $region8: #{custom_multi_loss.1} parent=0 // loop_exit
    _

</llo_original>
